<compile_context>
chip_gen: v6e
topology: v6e:2x2x1
jax: 0.10.0
libtpu: 0.0.40
codegen_flags: <defaults>
</compile_context>

<pallas_src>
import functools

import jax
import jax.numpy as jnp
from jax import lax
from jax.experimental import pallas as pl
from jax.experimental.pallas import tpu as pltpu

_LANES = 128


def _round_up(x, m):
    return ((x + m - 1) // m) * m


def _device_kind():
    try:
        return jax.devices()[0].device_kind.lower()
    except Exception:  # pragma: no cover - defensive fallback
        return ""


def _chip_config():
    """Per-generation block bytes / partials / buffering / VMEM budget."""
    kind = _device_kind()
    if "v7" in kind:
        # 3-deep x 8 MiB = 24 MiB, within the 32 MiB scoped default; raise the
        # limit anyway for headroom (64 MiB physical per TC).
        return dict(block_bytes=8 << 20, num_partials=2, buffers=3,
                    vmem_limit=48 << 20, native_abs_ok=True)
    if "v6" in kind:
        return dict(block_bytes=4 << 20, num_partials=1, buffers=2,
                    vmem_limit=None, native_abs_ok=True)
    # v5e (16 MiB scoped VMEM default) / unknown: conservative.
    return dict(block_bytes=4 << 20, num_partials=1, buffers=2,
                vmem_limit=None, native_abs_ok=False)


def _l1_kernel(v_ref, o_ref, *, block_rows, acc_rows, rows_valid, total_tiles,
               tiles_per_core, need_mask, native_abs):
    i = pl.program_id(1)

    @pl.when(i == 0)
    def _():
        o_ref[...] = jnp.zeros_like(o_ref)

    def load_abs():
        v = v_ref[...]
        if native_abs:
            # bf16 abs on packed vregs (v6e/v7x have bf16 VALUs); f32 acc.
            return jnp.abs(v).astype(jnp.float32)
        return jnp.abs(v.astype(jnp.float32))

    def accumulate(x):
        # acc_rows/8 independent vreg accumulation chains: pure VPU adds,
        # no cross-lane work; the single XLU reduce happens in the wrapper.
        o_ref[...] += x.reshape(block_rows // acc_rows, acc_rows,
                                _LANES).sum(axis=0)

    if not need_mask:
        accumulate(load_abs())
    else:
        c = pl.program_id(0)
        tile = c * tiles_per_core + i
        is_edge = tile >= total_tiles - 1  # ragged last tile or clamped dup

        @pl.when(jnp.logical_not(is_edge))
        def _():
            accumulate(load_abs())

        @pl.when(is_edge)
        def _():
            x = load_abs()
            row = tile * block_rows + lax.broadcasted_iota(
                jnp.int32, (block_rows, _LANES), 0)
            # NOTE: keep this a select (jnp.where), NOT multiply-by-mask: the
            # OOB region of a clamped/partial tile may hold NaN/Inf garbage.
            accumulate(jnp.where(row < rows_valid, x, 0.0))


def tvnorm_forward(t, x, v):
    """Equivalent of TVnorm.forward: returns torch.norm(v, 1) as a scalar."""
    del t, x  # unused by the reference forward

    cfg = _chip_config()

    v_flat = jnp.ravel(v)  # free reshape for contiguous data, native dtype
    n = v_flat.shape[0]
    if n == 0:
        return jnp.float32(0.0)

    itemsize = jnp.dtype(v.dtype).itemsize
    rows = n // _LANES
    rem = n - rows * _LANES

    # Non-lane-aligned remainder (<128 elems): sum it in the wrapper instead
    # of jnp.pad's full HBM copy of v.
    # TODO(synk): a manual 1-D DMA (pl.ANY) path would also avoid the prefix
    # slice copy XLA may emit when rem != 0.
    tail_sum = jnp.float32(0.0)
    if rem:
        tail_sum = jnp.sum(jnp.abs(v_flat[rows * _LANES:].astype(jnp.float32)))
    if rows == 0:
        return tail_sum

    head = v_flat if rem == 0 else v_flat[:rows * _LANES]
    v2d = head.reshape(rows, _LANES)

    # Sublane granularity for the native dtype (f32:8, bf16:16, int8:32).
    sub = max(8, 32 // max(itemsize, 1))
    tr_target = max(sub, (cfg["block_bytes"] // (_LANES * itemsize)) // sub * sub)
    tr = min(tr_target, _round_up(rows, sub))  # block rows

    total_tiles = pl.cdiv(rows, tr)
    nc = max(1, min(cfg["num_partials"], total_tiles))  # per-core partials
    tiles_per_core = pl.cdiv(total_tiles, nc)
    need_mask = (nc * tiles_per_core * tr) != rows

    # Accumulator width: up to 128 rows (16 independent f32 vreg chains),
    # shrunk so it divides the block rows (always reaches 8).
    acc_rows = 128
    while acc_rows > 8 and tr % acc_rows:
        acc_rows //= 2

    native_abs = cfg["native_abs_ok"] and jnp.issubdtype(v.dtype, jnp.floating)

    def in_index(c, i):
        # Clamp so a core's trailing (duplicate) tile never indexes past the
        # array; the in-kernel edge mask zeroes its contribution.
        return (jnp.minimum(c * tiles_per_core + i, total_tiles - 1), 0)

    kernel = functools.partial(
        _l1_kernel,
        block_rows=tr,
        acc_rows=acc_rows,
        rows_valid=rows,
        total_tiles=total_tiles,
        tiles_per_core=tiles_per_core,
        need_mask=need_mask,
        native_abs=native_abs,
    )

    in_spec_kwargs = {}
    if cfg["buffers"] != 2:
        in_spec_kwargs["pipeline_mode"] = pl.Buffered(cfg["buffers"])
    in_spec = pl.BlockSpec((tr, _LANES), in_index, **in_spec_kwargs)

    cp_kwargs = dict(dimension_semantics=("parallel", "arbitrary"))
    if cfg["vmem_limit"] is not None:
        cp_kwargs["vmem_limit_bytes"] = cfg["vmem_limit"]

    partials = pl.pallas_call(
        kernel,
        out_shape=jax.ShapeDtypeStruct((nc * acc_rows, _LANES), jnp.float32),
        grid_spec=pltpu.PrefetchScalarGridSpec(
            num_scalar_prefetch=0,
            grid=(nc, tiles_per_core),
            in_specs=[in_spec],
            out_specs=pl.BlockSpec((acc_rows, _LANES), lambda c, i: (c, 0)),
        ),
        compiler_params=pltpu.CompilerParams(**cp_kwargs),
        cost_estimate=pl.CostEstimate(
            flops=2 * n,
            transcendentals=0,
            bytes_accessed=n * itemsize + nc * acc_rows * _LANES * 4,
        ),
    )(v2d)

    # Single cheap cross-lane/sublane reduction of the per-core vreg partials.
    return jnp.sum(partials) + tail_sum


if __name__ == "__main__":
    key = jax.random.PRNGKey(0)
    kt, kx, kv = jax.random.split(key, 3)

    # Small shapes consistent with the module's generic forward(t, x, v).
    t = jax.random.normal(kt, (2,), dtype=jnp.float32)
    x = jax.random.normal(kx, (2, 4, 16, 16), dtype=jnp.float32)
    v = jax.random.normal(kv, (2, 4, 16, 16), dtype=jnp.float32)

    result = jax.block_until_ready(tvnorm_forward(t, x, v))

    ref = jnp.sum(jnp.abs(v))
    assert jnp.allclose(result, ref, rtol=1e-5, atol=1e-5), (result, ref)

    print("KERNEL_OK")
</pallas_src>

<mosaic_0001>
module attributes {stable_mosaic.version = 11 : i64} {
  func.func @_l1_kernel(%arg0: i32, %arg1: i32, %arg2: memref<16x128xf32, #tpu.memory_space<vmem>>, %arg3: memref<16x128xf32, #tpu.memory_space<vmem>>) attributes {dimension_semantics = [#tpu.dimension_semantics<parallel>, #tpu.dimension_semantics<arbitrary>], iteration_bounds = array<i64: 1, 1>, scalar_prefetch = 0 : i64, scratch_operands = 0 : i64, tpu.core_type = #tpu.core_type<tc>, window_params = [{transform_indices = @transform_0, window_bounds = array<i64: 16, 128>}, {transform_indices = @transform_1, window_bounds = array<i64: 16, 128>}]} {
    %c0_i32 = arith.constant 0 : i32
    %0 = arith.cmpi eq, %arg1, %c0_i32 : i32
    %1 = arith.extui %0 : i1 to i32
    %c0_i32_0 = arith.constant 0 : i32
    %2 = arith.cmpi ne, %1, %c0_i32_0 : i32
    scf.if %2 {
      %cst_6 = arith.constant 0.000000e+00 : f32
      %10 = vector.broadcast %cst_6 : f32 to vector<16x128xf32>
      %c0_7 = arith.constant 0 : index
      %c0_8 = arith.constant 0 : index
      %11 = vector.load %arg3[%c0_7, %c0_8] : memref<16x128xf32, #tpu.memory_space<vmem>>, vector<16x128xf32>
      tpu.vector_store %arg3[%c0_7, %c0_8], %10 {strides = array<i32>} : memref<16x128xf32, #tpu.memory_space<vmem>>, vector<16x128xf32>,
    } else {
    }
    %c0 = arith.constant 0 : index
    %c0_1 = arith.constant 0 : index
    %3 = vector.load %arg2[%c0, %c0_1] : memref<16x128xf32, #tpu.memory_space<vmem>>, vector<16x128xf32>
    %4 = math.absf %3 : vector<16x128xf32>
    %c0_2 = arith.constant 0 : index
    %c0_3 = arith.constant 0 : index
    %5 = vector.load %arg3[%c0_2, %c0_3] : memref<16x128xf32, #tpu.memory_space<vmem>>, vector<16x128xf32>
    %6 = vector.shape_cast %4 : vector<16x128xf32> to vector<1x16x128xf32>
    %cst = arith.constant dense<0.000000e+00> : vector<16x128xf32>
    %7 = vector.multi_reduction <add>, %6, %cst [0] : vector<1x16x128xf32> to vector<16x128xf32>
    %8 = arith.addf %5, %7 : vector<16x128xf32>
    %c0_4 = arith.constant 0 : index
    %c0_5 = arith.constant 0 : index
    %9 = vector.load %arg3[%c0_4, %c0_5] : memref<16x128xf32, #tpu.memory_space<vmem>>, vector<16x128xf32>
    tpu.vector_store %arg3[%c0_4, %c0_5], %8 {strides = array<i32>} : memref<16x128xf32, #tpu.memory_space<vmem>>, vector<16x128xf32>,
    return
  }
  func.func @transform_0(%arg0: i32, %arg1: i32) -> (i32, i32) {
    %c1_i32 = arith.constant 1 : i32
    %0 = arith.muli %arg0, %c1_i32 : i32
    %1 = arith.addi %0, %arg1 : i32
    %c0_i32 = arith.constant 0 : i32
    %2 = arith.minsi %1, %c0_i32 : i32
    %c0_i32_0 = arith.constant 0 : i32
    %c0_i32_1 = arith.constant 0 : i32
    return %2, %c0_i32_0 : i32, i32
  }
  func.func @transform_1(%arg0: i32, %arg1: i32) -> (i32, i32) {
    %c0_i32 = arith.constant 0 : i32
    %c0_i32_0 = arith.constant 0 : i32
    return %arg0, %c0_i32 : i32, i32
  }
}

</mosaic_0001>

<llo_original>
// kernel: tpu_custom_call.1
$region0: #{tpu_custom_call.1}
  #allocation0 [shape = 'u32[]', space=smem, size = 0x4, offset = 0x4, fixed_abs, tag = 'smem constant byte address 0x4 - core index']
  #allocation1 [shape = 'u32[144,128]{1,0:T(1,128)}', space=vmem, size = 0x12000, scoped, tag = 'internal scratch']
  %s0 = inlined_call_operand.hbm [shape: f32[16,128], index: 0, kind: input, shape index: {}]
  %s1 = inlined_call_operand.hbm [shape: f32[16,128], index: 1, kind: output, shape index: {}]
  %s2 = sld [smem:[#allocation0]]
  $region22: #{tpu_custom_call.1} parent=0
    _
  %s4 = ssub.s32 1, %s2
  %s5 = scalar_select 0, %s4, %s2
  $region1: #{tpu_custom_call.1} parent=0
    #allocation2 [shape = 'u8[8192]{0}', space=vmem, size = 0x2000, scoped, tag = 'input window, operand 0, single buffered']
    #allocation3 [shape = 's32[1]{0}', space=sflag, size = 0x4, scoped, tag = 'scoped memory for tpu_custom_call.1']
    #allocation4 [shape = 's32[1]{0}', space=sflag, size = 0x4, scoped, tag = 'scoped memory for tpu_custom_call.1']
    #allocation5 [shape = 'u8[8192]{0}', space=vmem, size = 0x2000, scoped, tag = 'output window, operand 0, single buffered']
    %6 = vsyncpa [#allocation3], 0
    %7 = vsyncpa [#allocation4], 0
    // Predicated region
    $region2: #{tpu_custom_call.1} parent=1 // pred_check
      _
    $region3: #{tpu_custom_call.1} parent=1 // pred_check_branch
      %9 = sbr.rel (0) target = $region5
    $region4: #{tpu_custom_call.1} parent=1 // pred_region
      %s10 = sadd.s32 0, 0
      %p11 = scmp.lt.s32.totalorder %s10, 0
      %s12 = scalar_select %p11, %s10, 0
      %s13 = smul.u32 2, %s12
      %s15 = ssub.s32 256, 256
      %16 = vsyncadd [#allocation3], %s15
      %s17 = smul.addr %s13, 128
      %s18 = scalar_lea.hbm %s0, %s17
      %s19 = sshll.u32 [#allocation2], 4
      %s20 = int_to_ptr.vmem [resolvable:$true] %s19
      %25 = dma.hbm_to_vmem [thread:$0]  %s18, 256, %s20, [#allocation3], 128, 128, 8
    $region5: #{tpu_custom_call.1} parent=1 // pred_fallthru
      _
    // Predicated region
    $region6: #{tpu_custom_call.1} parent=1 // pred_check
      _
    $region7: #{tpu_custom_call.1} parent=1 // pred_check_branch
      %27 = sbr.rel (0) target = $region9
    $region8: #{tpu_custom_call.1} parent=1 // pred_region
      %28 = dma.done [#allocation3], 256
    $region9: #{tpu_custom_call.1} parent=1 // pred_fallthru
      _
    %s29 = sadd.s32 0, 0
    %p30 = scmp.lt.s32.totalorder %s29, 0
    %s31 = scalar_select %p30, %s29, 0
    %s32 = smul.u32 2, %s31
    %p33 = scmp.eq.s32.totalorder 0, 0
    // Predicated region
    $region10: #{tpu_custom_call.1} parent=1 // pred_check
      %p34 = pneg %p33
    $region11: #{tpu_custom_call.1} parent=1 // pred_check_branch
      %36 = sbr.rel (%p34) target = $region13
    $region12: #{tpu_custom_call.1} parent=1 // pred_region
      %37 = vst [vmem:[#allocation5] sm:$0xff] 0.0
      %38 = vst [vmem:[#allocation5 + $0x8] sm:$0xff] 0.0
    $region13: #{tpu_custom_call.1} parent=1 // pred_fallthru
      _
    %v39 = vld [vmem:[#allocation2] sm:$0xff]
    %v40 = vld [vmem:[#allocation2 + $0x8] sm:$0xff]
    %v41 = vand.u32 2147483647, %v39
    %v42 = vand.u32 2147483647, %v40
    %v43 = vld [vmem:[#allocation5] sm:$0xff]
    %v44 = vld [vmem:[#allocation5 + $0x8] sm:$0xff]
    %v45 = vadd.f32 %v41, 0.0
    %v46 = vadd.f32 %v42, 0.0
    %v47 = vadd.f32 %v43, %v45
    %v48 = vadd.f32 %v44, %v46
    %49 = vst [vmem:[#allocation5] sm:$0xff] %v47
    %50 = vst [vmem:[#allocation5 + $0x8] sm:$0xff] %v48
    // Predicated region
    $region14: #{tpu_custom_call.1} parent=1 // pred_check
      _
    $region15: #{tpu_custom_call.1} parent=1 // pred_check_branch
      %52 = sbr.rel (0) target = $region17
    $region16: #{tpu_custom_call.1} parent=1 // pred_region
      %s54 = ssub.s32 256, 256
      %55 = vsyncadd [#allocation4], %s54
      %s56 = sshll.u32 [#allocation5], 4
      %s57 = int_to_ptr.vmem [resolvable:$true] %s56
      %62 = dma.vmem_to_hbm [thread:$0]  %s57, 256, %s1, [#allocation4], 128, 128, 8
    $region17: #{tpu_custom_call.1} parent=1 // pred_fallthru
      _
    // Predicated region
    $region18: #{tpu_custom_call.1} parent=1 // pred_check
      _
    $region19: #{tpu_custom_call.1} parent=1 // pred_check_branch
      %64 = sbr.rel (0) target = $region21
    $region20: #{tpu_custom_call.1} parent=1 // pred_region
      %65 = dma.done [#allocation4], 256
    $region21: #{tpu_custom_call.1} parent=1 // pred_fallthru
      _
    %66 = vsyncpa [#allocation3], 1
    %67 = vsyncpa [#allocation4], 1

</llo_original>
